<compile_context>
chip_gen: v5e
topology: v5e:2x2
jax: 0.10.0
libtpu: 0.0.40
codegen_flags: <defaults>
</compile_context>

<pallas_src>
import functools

import jax
import jax.numpy as jnp
from jax.experimental import pallas as pl
from jax.experimental.pallas import tpu as pltpu

_FC1 = 128  # fc1 output width (fixed by the PyTorch module)


def _round_up(n, m):
    return ((n + m - 1) // m) * m


# ----------------------------------------------------------------------------
# Kernel
# ----------------------------------------------------------------------------
def _lstm_mlp_kernel(x_ref, slab_ref, o_ref, *,
                     hidden_size, input_size, seq_len, batch):
    H, D, T, B = hidden_size, input_size, seq_len, batch
    G = 4 * H

    # Static row offsets into the packed weight slab (all 8-sublane aligned).
    r_wih = 0
    r_whh = r_wih + _round_up(D, 8)
    r_b = r_whh + H
    r_w1 = r_b + 8
    r_b1 = r_w1 + H
    r_w2 = r_b1 + 8
    r_b2 = r_w2 + _FC1

    # --- LSTM weights, loaded ONCE from the coalesced slab (single DMA for
    #     all parameters).  MLP-head weights are loaded after the recurrence.
    wih = slab_ref[r_wih:r_wih + D, 0:G]           # (D, 4H)
    whh = slab_ref[r_whh:r_whh + H, 0:G]           # (H, 4H)
    bias = slab_ref[r_b:r_b + 1, 0:G]              # (1, 4H)

    # --- Input projection for ALL timesteps in one MXU matmul, kept entirely
    #     in vregs (no VMEM scratch).  Row t*B + b holds x[b, t, :].
    xproj = jnp.dot(x_ref[...], wih,
                    preferred_element_type=jnp.float32) + bias   # (T*B, 4H)

    # One EUP activation per step over the full, lane-aligned 4H gate vector:
    # gate order is [i, f, o, g] and sigmoid(x) == 0.5*tanh(0.5*x) + 0.5, so a
    # single tanh plus a hoisted per-lane affine covers the three sigmoid
    # gates and the tanh gate without slicing at 3H = 192 lanes.
    lane = jax.lax.broadcasted_iota(jnp.int32, (1, G), 1)
    is_sig = lane < 3 * H
    g_scale = jnp.where(is_sig, 0.5, 1.0).astype(jnp.float32)    # pre & post
    g_shift = jnp.where(is_sig, 0.5, 0.0).astype(jnp.float32)

    h = jnp.zeros((B, H), jnp.float32)
    c = jnp.zeros((B, H), jnp.float32)

    # Recurrence, fully unrolled at trace time (T is small/static); only
    # h @ W_hh stays on the serial dependency chain.
    # TODO(synk): for large T switch to lax.fori_loop(..., unroll=k) over a
    # (T, B, 4H)-shaped projection to bound vreg live ranges.
    # TODO(synk): hold W_hh resident in MXU weight registers across the steps
    # via pltpu.matmul_push_rhs / matmul_acc_lhs / matmul_pop to remove the
    # per-step RHS push from the critical path.
    for t in range(T):
        gates = xproj[t * B:(t + 1) * B, :] + jnp.dot(
            h, whh, preferred_element_type=jnp.float32)          # (B, 4H)
        act = jnp.tanh(gates * g_scale) * g_scale + g_shift
        i_g = act[:, 0 * H:1 * H]
        f_g = act[:, 1 * H:2 * H]
        o_g = act[:, 2 * H:3 * H]
        g_g = act[:, 3 * H:4 * H]
        c = f_g * c + i_g * g_g
        h = o_g * jnp.tanh(c)

    # --- MLP head on the final hidden state (batch > 1 branch of the module).
    #     Head weights are loaded only now, keeping them out of the loop's
    #     live register set.
    w1 = slab_ref[r_w1:r_w1 + H, 0:_FC1]           # (H, 128)
    b1 = slab_ref[r_b1:r_b1 + 1, 0:_FC1]           # (1, 128)
    w2 = slab_ref[r_w2:r_w2 + _FC1, 0:_FC1]        # (128, 128) zero-padded
    b2 = slab_ref[r_b2:r_b2 + 1, 0:_FC1]           # (1, 128)  zero-padded

    z = jnp.tanh(jnp.dot(h, w1, preferred_element_type=jnp.float32) + b1)
    out = jnp.dot(z, w2, preferred_element_type=jnp.float32) + b2   # (B, 128)
    o_ref[...] = out.astype(o_ref.dtype)


# ----------------------------------------------------------------------------
# Wrapper
# ----------------------------------------------------------------------------
def qnetwork_lstm_forward(x, prepared):
    """x: (B, T, D_in) float32, batch_first. Returns (B, n_actions + 1).

    Implements the batch_size > 1 semantics of the PyTorch module.
    """
    # TODO(synk): the PyTorch batch_size==1 branch (per-timestep head output)
    # is not implemented; this kernel implements the batch>1 semantics.
    slab, dims = prepared
    H, D_in, n_out = dims["hidden"], dims["input"], dims["n_out"]
    B, T, D = x.shape
    if T < 1:
        raise ValueError("sequence length must be >= 1")
    if D != D_in:
        raise ValueError("input feature size mismatch")

    # Time-major flatten so row t*B + b holds x[b, t, :]; lets the kernel do
    # the whole input projection as one (T*B, D_in) @ (D_in, 4H) matmul.
    x_flat = jnp.transpose(x, (1, 0, 2)).reshape(T * B, D)

    kernel = functools.partial(_lstm_mlp_kernel, hidden_size=H,
                               input_size=D, seq_len=T, batch=B)
    vmem = pl.BlockSpec(memory_space=pltpu.MemorySpace.VMEM)

    # Single invocation, no grid, exactly two HBM->VMEM DMAs (x + weight
    # slab).  Total VMEM footprint ~300 KiB: far below the scoped limit on
    # v5e/v6e/v7x.
    # TODO(synk): for large deployment batches add a batch grid axis (tile a
    # multiple of 8 rows) with dimension_semantics=("parallel",) to use both
    # v7x TensorCores; tile over T and/or set
    # pltpu.CompilerParams(vmem_limit_bytes=...) once T*B*(D_in+4H)*4 bytes
    # approaches the scoped VMEM default.
    out_pad = pl.pallas_call(
        kernel,
        out_shape=jax.ShapeDtypeStruct((B, _FC1), jnp.float32),
        in_specs=[vmem, vmem],
        out_specs=vmem,
    )(x_flat, slab)

    # Kernel output is lane-dense (B, 128); the real logits are the first
    # n_out columns (the rest are exact zeros from the padded w2/b2).
    return out_pad[:, :n_out]


# ----------------------------------------------------------------------------
# Parameters (PyTorch-style) and kernel-layout preparation
# ----------------------------------------------------------------------------
def init_raw_params(key, input_size=8, hidden_size=64, n_actions=1):
    """Synthetic parameters in PyTorch layout / gate order [i, f, g, o]."""
    ks = jax.random.split(key, 8)
    H = hidden_size
    k_lstm = 1.0 / jnp.sqrt(H)
    k_fc1 = 1.0 / jnp.sqrt(H)
    k_fc2 = 1.0 / jnp.sqrt(128.0)

    w_ih = jax.random.uniform(ks[0], (4 * H, input_size), jnp.float32,
                              -k_lstm, k_lstm)
    w_hh = jax.random.uniform(ks[1], (4 * H, H), jnp.float32, -k_lstm, k_lstm)
    b_ih = jax.random.uniform(ks[2], (4 * H,), jnp.float32, -k_lstm, k_lstm)
    b_hh = jax.random.uniform(ks[3], (4 * H,), jnp.float32, -k_lstm, k_lstm)
    w1 = jax.random.uniform(ks[4], (_FC1, H), jnp.float32, -k_fc1, k_fc1)
    b1 = jax.random.uniform(ks[5], (_FC1,), jnp.float32, -k_fc1, k_fc1)
    w2 = jax.random.uniform(ks[6], (n_actions + 1, _FC1), jnp.float32,
                            -k_fc2, k_fc2)
    b2 = jax.random.uniform(ks[7], (n_actions + 1,), jnp.float32,
                            -k_fc2, k_fc2)
    return (w_ih, w_hh, b_ih, b_hh, w1, b1, w2, b2)


def _permute_ifgo_to_ifog(m, H):
    """Reorder the 4H gate blocks along axis 0 from [i,f,g,o] to [i,f,o,g]."""
    return jnp.concatenate([m[:H], m[H:2 * H], m[3 * H:], m[2 * H:3 * H]],
                           axis=0)


def prepare_params(raw):
    """Kernel layout: permute gates, fold biases, transpose, pack ONE slab.

    All parameters are packed into a single (rows, lanes) f32 slab so the
    kernel start issues one weight DMA.  Row offsets are 8-sublane aligned;
    lanes are right-padded to max(4H, 128).  Keep everything f32 (v5e has no
    bf16 VPU/EUP path); on v6e/v7x a bf16 slab would be a modest DMA win only.
    """
    w_ih, w_hh, b_ih, b_hh, w1, b1, w2, b2 = raw
    H = w_hh.shape[1]
    D = w_ih.shape[1]
    n_out = w2.shape[0]
    G = 4 * H
    lanes = _round_up(max(G, _FC1), 128)

    wih_p = _permute_ifgo_to_ifog(w_ih, H).T                    # (D, 4H)
    whh_p = _permute_ifgo_to_ifog(w_hh, H).T                    # (H, 4H)
    bias_p = _permute_ifgo_to_ifog(b_ih + b_hh, H)[None, :]     # (1, 4H)
    w1_t = w1.T                                                 # (H, 128)
    b1_r = b1[None, :]                                          # (1, 128)
    w2_t = w2.T                                                 # (128, n_out)
    b2_r = b2[None, :]                                          # (1, n_out)

    def pad_block(a, rows):
        r, c = a.shape
        return jnp.pad(a, ((0, rows - r), (0, lanes - c)))

    blocks = [
        pad_block(wih_p, _round_up(D, 8)),   # rows r_wih .. r_whh
        pad_block(whh_p, H),                 # rows r_whh .. r_b
        pad_block(bias_p, 8),                # rows r_b   .. r_w1
        pad_block(w1_t, H),                  # rows r_w1  .. r_b1
        pad_block(b1_r, 8),                  # rows r_b1  .. r_w2
        pad_block(w2_t, _FC1),               # rows r_w2  .. r_b2 (cols padded)
        pad_block(b2_r, 8),                  # rows r_b2  .. end
    ]
    slab = jnp.concatenate(blocks, axis=0)
    dims = dict(hidden=H, input=D, n_out=n_out)
    return slab, dims


# ----------------------------------------------------------------------------
# Pure-JAX reference (PyTorch-order weights) for correctness checking
# ----------------------------------------------------------------------------
def _reference_forward(x, raw):
    w_ih, w_hh, b_ih, b_hh, w1, b1, w2, b2 = raw
    B = x.shape[0]
    H = w_hh.shape[1]
    bias = b_ih + b_hh

    def step(carry, x_t):
        h, c = carry
        gates = x_t @ w_ih.T + h @ w_hh.T + bias
        i = jax.nn.sigmoid(gates[:, 0 * H:1 * H])
        f = jax.nn.sigmoid(gates[:, 1 * H:2 * H])
        g = jnp.tanh(gates[:, 2 * H:3 * H])
        o = jax.nn.sigmoid(gates[:, 3 * H:4 * H])
        c = f * c + i * g
        h = o * jnp.tanh(c)
        return (h, c), None

    h0 = jnp.zeros((B, H), jnp.float32)
    c0 = jnp.zeros((B, H), jnp.float32)
    (h_last, _), _ = jax.lax.scan(step, (h0, c0), jnp.transpose(x, (1, 0, 2)))
    z = jnp.tanh(h_last @ w1.T + b1)
    return z @ w2.T + b2


if __name__ == "__main__":
    key = jax.random.PRNGKey(0)
    k_x, k_p = jax.random.split(key)

    B, T, D_in, H, n_actions = 2, 8, 8, 64, 1
    x = jax.random.normal(k_x, (B, T, D_in), jnp.float32)

    raw = init_raw_params(k_p, input_size=D_in, hidden_size=H,
                          n_actions=n_actions)
    prepared = prepare_params(raw)

    out = qnetwork_lstm_forward(x, prepared)
    out = jax.block_until_ready(out)

    ref = _reference_forward(x, raw)
    assert out.shape == (B, n_actions + 1)
    assert jnp.allclose(out, ref, atol=1e-4, rtol=1e-4), (out, ref)

    print("KERNEL_OK")
</pallas_src>

<mosaic_0001>
module attributes {stable_mosaic.version = 11 : i64} {
  func.func @_lstm_mlp_kernel(%arg0: memref<16x8xf32, #tpu.memory_space<vmem>>, %arg1: memref<288x256xf32, #tpu.memory_space<vmem>>, %arg2: memref<2x128xf32, #tpu.memory_space<vmem>>) attributes {dimension_semantics = [], scalar_prefetch = 0 : i64, scratch_operands = 0 : i64, tpu.core_type = #tpu.core_type<tc>} {
    %c0 = arith.constant 0 : index
    %c0_0 = arith.constant 0 : index
    %0 = vector.load %arg1[%c0, %c0_0] : memref<288x256xf32, #tpu.memory_space<vmem>>, vector<8x256xf32>
    %c8 = arith.constant 8 : index
    %c0_1 = arith.constant 0 : index
    %1 = vector.load %arg1[%c8, %c0_1] : memref<288x256xf32, #tpu.memory_space<vmem>>, vector<64x256xf32>
    %c72 = arith.constant 72 : index
    %c0_2 = arith.constant 0 : index
    %2 = vector.load %arg1[%c72, %c0_2] : memref<288x256xf32, #tpu.memory_space<vmem>>, vector<1x256xf32>
    %c0_3 = arith.constant 0 : index
    %c0_4 = arith.constant 0 : index
    %3 = vector.load %arg0[%c0_3, %c0_4] : memref<16x8xf32, #tpu.memory_space<vmem>>, vector<16x8xf32>
    %cst = arith.constant dense<0.000000e+00> : vector<16x256xf32>
    %4 = tpu.matmul %3, %0, %cst {dimension_numbers = #tpu.dot_dimension_numbers<[1], [0], [0], [1], [0, 0, 1, 1], [], []>} : vector<16x8xf32>, vector<8x256xf32>, vector<16x256xf32> -> vector<16x256xf32>
    %5 = vector.broadcast %2 : vector<1x256xf32> to vector<16x256xf32>
    %6 = arith.addf %4, %5 : vector<16x256xf32>
    %7 = tpu.iota {dimensions = array<i32: 1>} : vector<1x256xi32>
    %c192_i32 = arith.constant 192 : i32
    %8 = vector.broadcast %c192_i32 : i32 to vector<1x256xi32>
    %9 = arith.cmpi slt, %7, %8 : vector<1x256xi32>
    %cst_5 = arith.constant 5.000000e-01 : f32
    %cst_6 = arith.constant 1.000000e+00 : f32
    %10 = vector.broadcast %cst_5 : f32 to vector<1x256xf32>
    %11 = vector.broadcast %cst_6 : f32 to vector<1x256xf32>
    %12 = arith.select %9, %10, %11 : vector<1x256xi1>, vector<1x256xf32>
    %cst_7 = arith.constant 5.000000e-01 : f32
    %cst_8 = arith.constant 0.000000e+00 : f32
    %13 = vector.broadcast %cst_7 : f32 to vector<1x256xf32>
    %14 = vector.broadcast %cst_8 : f32 to vector<1x256xf32>
    %15 = arith.select %9, %13, %14 : vector<1x256xi1>, vector<1x256xf32>
    %cst_9 = arith.constant 0.000000e+00 : f32
    %16 = vector.broadcast %cst_9 : f32 to vector<2x64xf32>
    %cst_10 = arith.constant 0.000000e+00 : f32
    %17 = vector.broadcast %cst_10 : f32 to vector<2x64xf32>
    %18 = vector.extract_strided_slice %6 {offsets = [0, 0], sizes = [2, 256], strides = [1, 1]} : vector<16x256xf32> to vector<2x256xf32>
    %cst_11 = arith.constant dense<0.000000e+00> : vector<2x256xf32>
    %19 = tpu.matmul %16, %1, %cst_11 {dimension_numbers = #tpu.dot_dimension_numbers<[1], [0], [0], [1], [0, 0, 1, 1], [], []>} : vector<2x64xf32>, vector<64x256xf32>, vector<2x256xf32> -> vector<2x256xf32>
    %20 = arith.addf %18, %19 : vector<2x256xf32>
    %21 = vector.broadcast %12 : vector<1x256xf32> to vector<2x256xf32>
    %22 = arith.mulf %20, %21 : vector<2x256xf32>
    %23 = math.tanh %22 : vector<2x256xf32>
    %24 = vector.broadcast %12 : vector<1x256xf32> to vector<2x256xf32>
    %25 = arith.mulf %23, %24 : vector<2x256xf32>
    %26 = vector.broadcast %15 : vector<1x256xf32> to vector<2x256xf32>
    %27 = arith.addf %25, %26 : vector<2x256xf32>
    %28 = vector.extract_strided_slice %27 {offsets = [0, 0], sizes = [2, 64], strides = [1, 1]} : vector<2x256xf32> to vector<2x64xf32>
    %29 = vector.extract_strided_slice %27 {offsets = [0, 64], sizes = [2, 64], strides = [1, 1]} : vector<2x256xf32> to vector<2x64xf32>
    %30 = vector.extract_strided_slice %27 {offsets = [0, 128], sizes = [2, 64], strides = [1, 1]} : vector<2x256xf32> to vector<2x64xf32>
    %31 = vector.extract_strided_slice %27 {offsets = [0, 192], sizes = [2, 64], strides = [1, 1]} : vector<2x256xf32> to vector<2x64xf32>
    %32 = arith.mulf %29, %17 : vector<2x64xf32>
    %33 = arith.mulf %28, %31 : vector<2x64xf32>
    %34 = arith.addf %32, %33 : vector<2x64xf32>
    %35 = math.tanh %34 : vector<2x64xf32>
    %36 = arith.mulf %30, %35 : vector<2x64xf32>
    %37 = vector.extract_strided_slice %6 {offsets = [2, 0], sizes = [2, 256], strides = [1, 1]} : vector<16x256xf32> to vector<2x256xf32>
    %cst_12 = arith.constant dense<0.000000e+00> : vector<2x256xf32>
    %38 = tpu.matmul %36, %1, %cst_12 {dimension_numbers = #tpu.dot_dimension_numbers<[1], [0], [0], [1], [0, 0, 1, 1], [], []>} : vector<2x64xf32>, vector<64x256xf32>, vector<2x256xf32> -> vector<2x256xf32>
    %39 = arith.addf %37, %38 : vector<2x256xf32>
    %40 = vector.broadcast %12 : vector<1x256xf32> to vector<2x256xf32>
    %41 = arith.mulf %39, %40 : vector<2x256xf32>
    %42 = math.tanh %41 : vector<2x256xf32>
    %43 = vector.broadcast %12 : vector<1x256xf32> to vector<2x256xf32>
    %44 = arith.mulf %42, %43 : vector<2x256xf32>
    %45 = vector.broadcast %15 : vector<1x256xf32> to vector<2x256xf32>
    %46 = arith.addf %44, %45 : vector<2x256xf32>
    %47 = vector.extract_strided_slice %46 {offsets = [0, 0], sizes = [2, 64], strides = [1, 1]} : vector<2x256xf32> to vector<2x64xf32>
    %48 = vector.extract_strided_slice %46 {offsets = [0, 64], sizes = [2, 64], strides = [1, 1]} : vector<2x256xf32> to vector<2x64xf32>
    %49 = vector.extract_strided_slice %46 {offsets = [0, 128], sizes = [2, 64], strides = [1, 1]} : vector<2x256xf32> to vector<2x64xf32>
    %50 = vector.extract_strided_slice %46 {offsets = [0, 192], sizes = [2, 64], strides = [1, 1]} : vector<2x256xf32> to vector<2x64xf32>
    %51 = arith.mulf %48, %34 : vector<2x64xf32>
    %52 = arith.mulf %47, %50 : vector<2x64xf32>
    %53 = arith.addf %51, %52 : vector<2x64xf32>
    %54 = math.tanh %53 : vector<2x64xf32>
    %55 = arith.mulf %49, %54 : vector<2x64xf32>
    %56 = vector.extract_strided_slice %6 {offsets = [4, 0], sizes = [2, 256], strides = [1, 1]} : vector<16x256xf32> to vector<2x256xf32>
    %cst_13 = arith.constant dense<0.000000e+00> : vector<2x256xf32>
    %57 = tpu.matmul %55, %1, %cst_13 {dimension_numbers = #tpu.dot_dimension_numbers<[1], [0], [0], [1], [0, 0, 1, 1], [], []>} : vector<2x64xf32>, vector<64x256xf32>, vector<2x256xf32> -> vector<2x256xf32>
    %58 = arith.addf %56, %57 : vector<2x256xf32>
    %59 = vector.broadcast %12 : vector<1x256xf32> to vector<2x256xf32>
    %60 = arith.mulf %58, %59 : vector<2x256xf32>
    %61 = math.tanh %60 : vector<2x256xf32>
    %62 = vector.broadcast %12 : vector<1x256xf32> to vector<2x256xf32>
    %63 = arith.mulf %61, %62 : vector<2x256xf32>
    %64 = vector.broadcast %15 : vector<1x256xf32> to vector<2x256xf32>
    %65 = arith.addf %63, %64 : vector<2x256xf32>
    %66 = vector.extract_strided_slice %65 {offsets = [0, 0], sizes = [2, 64], strides = [1, 1]} : vector<2x256xf32> to vector<2x64xf32>
    %67 = vector.extract_strided_slice %65 {offsets = [0, 64], sizes = [2, 64], strides = [1, 1]} : vector<2x256xf32> to vector<2x64xf32>
    %68 = vector.extract_strided_slice %65 {offsets = [0, 128], sizes = [2, 64], strides = [1, 1]} : vector<2x256xf32> to vector<2x64xf32>
    %69 = vector.extract_strided_slice %65 {offsets = [0, 192], sizes = [2, 64], strides = [1, 1]} : vector<2x256xf32> to vector<2x64xf32>
    %70 = arith.mulf %67, %53 : vector<2x64xf32>
    %71 = arith.mulf %66, %69 : vector<2x64xf32>
    %72 = arith.addf %70, %71 : vector<2x64xf32>
    %73 = math.tanh %72 : vector<2x64xf32>
    %74 = arith.mulf %68, %73 : vector<2x64xf32>
    %75 = vector.extract_strided_slice %6 {offsets = [6, 0], sizes = [2, 256], strides = [1, 1]} : vector<16x256xf32> to vector<2x256xf32>
    %cst_14 = arith.constant dense<0.000000e+00> : vector<2x256xf32>
    %76 = tpu.matmul %74, %1, %cst_14 {dimension_numbers = #tpu.dot_dimension_numbers<[1], [0], [0], [1], [0, 0, 1, 1], [], []>} : vector<2x64xf32>, vector<64x256xf32>, vector<2x256xf32> -> vector<2x256xf32>
    %77 = arith.addf %75, %76 : vector<2x256xf32>
    %78 = vector.broadcast %12 : vector<1x256xf32> to vector<2x256xf32>
    %79 = arith.mulf %77, %78 : vector<2x256xf32>
    %80 = math.tanh %79 : vector<2x256xf32>
    %81 = vector.broadcast %12 : vector<1x256xf32> to vector<2x256xf32>
    %82 = arith.mulf %80, %81 : vector<2x256xf32>
    %83 = vector.broadcast %15 : vector<1x256xf32> to vector<2x256xf32>
    %84 = arith.addf %82, %83 : vector<2x256xf32>
    %85 = vector.extract_strided_slice %84 {offsets = [0, 0], sizes = [2, 64], strides = [1, 1]} : vector<2x256xf32> to vector<2x64xf32>
    %86 = vector.extract_strided_slice %84 {offsets = [0, 64], sizes = [2, 64], strides = [1, 1]} : vector<2x256xf32> to vector<2x64xf32>
    %87 = vector.extract_strided_slice %84 {offsets = [0, 128], sizes = [2, 64], strides = [1, 1]} : vector<2x256xf32> to vector<2x64xf32>
    %88 = vector.extract_strided_slice %84 {offsets = [0, 192], sizes = [2, 64], strides = [1, 1]} : vector<2x256xf32> to vector<2x64xf32>
    %89 = arith.mulf %86, %72 : vector<2x64xf32>
    %90 = arith.mulf %85, %88 : vector<2x64xf32>
    %91 = arith.addf %89, %90 : vector<2x64xf32>
    %92 = math.tanh %91 : vector<2x64xf32>
    %93 = arith.mulf %87, %92 : vector<2x64xf32>
    %94 = vector.extract_strided_slice %6 {offsets = [8, 0], sizes = [2, 256], strides = [1, 1]} : vector<16x256xf32> to vector<2x256xf32>
    %cst_15 = arith.constant dense<0.000000e+00> : vector<2x256xf32>
    %95 = tpu.matmul %93, %1, %cst_15 {dimension_numbers = #tpu.dot_dimension_numbers<[1], [0], [0], [1], [0, 0, 1, 1], [], []>} : vector<2x64xf32>, vector<64x256xf32>, vector<2x256xf32> -> vector<2x256xf32>
    %96 = arith.addf %94, %95 : vector<2x256xf32>
    %97 = vector.broadcast %12 : vector<1x256xf32> to vector<2x256xf32>
    %98 = arith.mulf %96, %97 : vector<2x256xf32>
    %99 = math.tanh %98 : vector<2x256xf32>
    %100 = vector.broadcast %12 : vector<1x256xf32> to vector<2x256xf32>
    %101 = arith.mulf %99, %100 : vector<2x256xf32>
    %102 = vector.broadcast %15 : vector<1x256xf32> to vector<2x256xf32>
    %103 = arith.addf %101, %102 : vector<2x256xf32>
    %104 = vector.extract_strided_slice %103 {offsets = [0, 0], sizes = [2, 64], strides = [1, 1]} : vector<2x256xf32> to vector<2x64xf32>
    %105 = vector.extract_strided_slice %103 {offsets = [0, 64], sizes = [2, 64], strides = [1, 1]} : vector<2x256xf32> to vector<2x64xf32>
    %106 = vector.extract_strided_slice %103 {offsets = [0, 128], sizes = [2, 64], strides = [1, 1]} : vector<2x256xf32> to vector<2x64xf32>
    %107 = vector.extract_strided_slice %103 {offsets = [0, 192], sizes = [2, 64], strides = [1, 1]} : vector<2x256xf32> to vector<2x64xf32>
    %108 = arith.mulf %105, %91 : vector<2x64xf32>
    %109 = arith.mulf %104, %107 : vector<2x64xf32>
    %110 = arith.addf %108, %109 : vector<2x64xf32>
    %111 = math.tanh %110 : vector<2x64xf32>
    %112 = arith.mulf %106, %111 : vector<2x64xf32>
    %113 = vector.extract_strided_slice %6 {offsets = [10, 0], sizes = [2, 256], strides = [1, 1]} : vector<16x256xf32> to vector<2x256xf32>
    %cst_16 = arith.constant dense<0.000000e+00> : vector<2x256xf32>
    %114 = tpu.matmul %112, %1, %cst_16 {dimension_numbers = #tpu.dot_dimension_numbers<[1], [0], [0], [1], [0, 0, 1, 1], [], []>} : vector<2x64xf32>, vector<64x256xf32>, vector<2x256xf32> -> vector<2x256xf32>
    %115 = arith.addf %113, %114 : vector<2x256xf32>
    %116 = vector.broadcast %12 : vector<1x256xf32> to vector<2x256xf32>
    %117 = arith.mulf %115, %116 : vector<2x256xf32>
    %118 = math.tanh %117 : vector<2x256xf32>
    %119 = vector.broadcast %12 : vector<1x256xf32> to vector<2x256xf32>
    %120 = arith.mulf %118, %119 : vector<2x256xf32>
    %121 = vector.broadcast %15 : vector<1x256xf32> to vector<2x256xf32>
    %122 = arith.addf %120, %121 : vector<2x256xf32>
    %123 = vector.extract_strided_slice %122 {offsets = [0, 0], sizes = [2, 64], strides = [1, 1]} : vector<2x256xf32> to vector<2x64xf32>
    %124 = vector.extract_strided_slice %122 {offsets = [0, 64], sizes = [2, 64], strides = [1, 1]} : vector<2x256xf32> to vector<2x64xf32>
    %125 = vector.extract_strided_slice %122 {offsets = [0, 128], sizes = [2, 64], strides = [1, 1]} : vector<2x256xf32> to vector<2x64xf32>
    %126 = vector.extract_strided_slice %122 {offsets = [0, 192], sizes = [2, 64], strides = [1, 1]} : vector<2x256xf32> to vector<2x64xf32>
    %127 = arith.mulf %124, %110 : vector<2x64xf32>
    %128 = arith.mulf %123, %126 : vector<2x64xf32>
    %129 = arith.addf %127, %128 : vector<2x64xf32>
    %130 = math.tanh %129 : vector<2x64xf32>
    %131 = arith.mulf %125, %130 : vector<2x64xf32>
    %132 = vector.extract_strided_slice %6 {offsets = [12, 0], sizes = [2, 256], strides = [1, 1]} : vector<16x256xf32> to vector<2x256xf32>
    %cst_17 = arith.constant dense<0.000000e+00> : vector<2x256xf32>
    %133 = tpu.matmul %131, %1, %cst_17 {dimension_numbers = #tpu.dot_dimension_numbers<[1], [0], [0], [1], [0, 0, 1, 1], [], []>} : vector<2x64xf32>, vector<64x256xf32>, vector<2x256xf32> -> vector<2x256xf32>
    %134 = arith.addf %132, %133 : vector<2x256xf32>
    %135 = vector.broadcast %12 : vector<1x256xf32> to vector<2x256xf32>
    %136 = arith.mulf %134, %135 : vector<2x256xf32>
    %137 = math.tanh %136 : vector<2x256xf32>
    %138 = vector.broadcast %12 : vector<1x256xf32> to vector<2x256xf32>
    %139 = arith.mulf %137, %138 : vector<2x256xf32>
    %140 = vector.broadcast %15 : vector<1x256xf32> to vector<2x256xf32>
    %141 = arith.addf %139, %140 : vector<2x256xf32>
    %142 = vector.extract_strided_slice %141 {offsets = [0, 0], sizes = [2, 64], strides = [1, 1]} : vector<2x256xf32> to vector<2x64xf32>
    %143 = vector.extract_strided_slice %141 {offsets = [0, 64], sizes = [2, 64], strides = [1, 1]} : vector<2x256xf32> to vector<2x64xf32>
    %144 = vector.extract_strided_slice %141 {offsets = [0, 128], sizes = [2, 64], strides = [1, 1]} : vector<2x256xf32> to vector<2x64xf32>
    %145 = vector.extract_strided_slice %141 {offsets = [0, 192], sizes = [2, 64], strides = [1, 1]} : vector<2x256xf32> to vector<2x64xf32>
    %146 = arith.mulf %143, %129 : vector<2x64xf32>
    %147 = arith.mulf %142, %145 : vector<2x64xf32>
    %148 = arith.addf %146, %147 : vector<2x64xf32>
    %149 = math.tanh %148 : vector<2x64xf32>
    %150 = arith.mulf %144, %149 : vector<2x64xf32>
    %151 = vector.extract_strided_slice %6 {offsets = [14, 0], sizes = [2, 256], strides = [1, 1]} : vector<16x256xf32> to vector<2x256xf32>
    %cst_18 = arith.constant dense<0.000000e+00> : vector<2x256xf32>
    %152 = tpu.matmul %150, %1, %cst_18 {dimension_numbers = #tpu.dot_dimension_numbers<[1], [0], [0], [1], [0, 0, 1, 1], [], []>} : vector<2x64xf32>, vector<64x256xf32>, vector<2x256xf32> -> vector<2x256xf32>
    %153 = arith.addf %151, %152 : vector<2x256xf32>
    %154 = vector.broadcast %12 : vector<1x256xf32> to vector<2x256xf32>
    %155 = arith.mulf %153, %154 : vector<2x256xf32>
    %156 = math.tanh %155 : vector<2x256xf32>
    %157 = vector.broadcast %12 : vector<1x256xf32> to vector<2x256xf32>
    %158 = arith.mulf %156, %157 : vector<2x256xf32>
    %159 = vector.broadcast %15 : vector<1x256xf32> to vector<2x256xf32>
    %160 = arith.addf %158, %159 : vector<2x256xf32>
    %161 = vector.extract_strided_slice %160 {offsets = [0, 0], sizes = [2, 64], strides = [1, 1]} : vector<2x256xf32> to vector<2x64xf32>
    %162 = vector.extract_strided_slice %160 {offsets = [0, 64], sizes = [2, 64], strides = [1, 1]} : vector<2x256xf32> to vector<2x64xf32>
    %163 = vector.extract_strided_slice %160 {offsets = [0, 128], sizes = [2, 64], strides = [1, 1]} : vector<2x256xf32> to vector<2x64xf32>
    %164 = vector.extract_strided_slice %160 {offsets = [0, 192], sizes = [2, 64], strides = [1, 1]} : vector<2x256xf32> to vector<2x64xf32>
    %165 = arith.mulf %162, %148 : vector<2x64xf32>
    %166 = arith.mulf %161, %164 : vector<2x64xf32>
    %167 = arith.addf %165, %166 : vector<2x64xf32>
    %168 = math.tanh %167 : vector<2x64xf32>
    %169 = arith.mulf %163, %168 : vector<2x64xf32>
    %c80 = arith.constant 80 : index
    %c0_19 = arith.constant 0 : index
    %170 = vector.load %arg1[%c80, %c0_19] : memref<288x256xf32, #tpu.memory_space<vmem>>, vector<64x128xf32>
    %c144 = arith.constant 144 : index
    %c0_20 = arith.constant 0 : index
    %171 = vector.load %arg1[%c144, %c0_20] : memref<288x256xf32, #tpu.memory_space<vmem>>, vector<1x128xf32>
    %c152 = arith.constant 152 : index
    %c0_21 = arith.constant 0 : index
    %172 = vector.load %arg1[%c152, %c0_21] : memref<288x256xf32, #tpu.memory_space<vmem>>, vector<128x128xf32>
    %c280 = arith.constant 280 : index
    %c0_22 = arith.constant 0 : index
    %173 = vector.load %arg1[%c280, %c0_22] : memref<288x256xf32, #tpu.memory_space<vmem>>, vector<1x128xf32>
    %cst_23 = arith.constant dense<0.000000e+00> : vector<2x128xf32>
    %174 = tpu.matmul %169, %170, %cst_23 {dimension_numbers = #tpu.dot_dimension_numbers<[1], [0], [0], [1], [0, 0, 1, 1], [], []>} : vector<2x64xf32>, vector<64x128xf32>, vector<2x128xf32> -> vector<2x128xf32>
    %175 = vector.broadcast %171 : vector<1x128xf32> to vector<2x128xf32>
    %176 = arith.addf %174, %175 : vector<2x128xf32>
    %177 = math.tanh %176 : vector<2x128xf32>
    %cst_24 = arith.constant dense<0.000000e+00> : vector<2x128xf32>
    %178 = tpu.matmul %177, %172, %cst_24 {dimension_numbers = #tpu.dot_dimension_numbers<[1], [0], [0], [1], [0, 0, 1, 1], [], []>} : vector<2x128xf32>, vector<128x128xf32>, vector<2x128xf32> -> vector<2x128xf32>
    %179 = vector.broadcast %173 : vector<1x128xf32> to vector<2x128xf32>
    %180 = arith.addf %178, %179 : vector<2x128xf32>
    %c0_25 = arith.constant 0 : index
    %c0_26 = arith.constant 0 : index
    %181 = vector.load %arg2[%c0_25, %c0_26] : memref<2x128xf32, #tpu.memory_space<vmem>>, vector<2x128xf32>
    tpu.vector_store %arg2[%c0_25, %c0_26], %180 {strides = array<i32>} : memref<2x128xf32, #tpu.memory_space<vmem>>, vector<2x128xf32>,
    return
  }
}

</mosaic_0001>

<llo_original>
// kernel: tpu_custom_call.1
$region0: #{tpu_custom_call.1}
  #allocation0 [shape = 'u32[]', space=smem, size = 0x4, offset = 0x4, fixed_abs, tag = 'smem constant byte address 0x4 - core index']
  #allocation1 [shape = 'u32[72,128]{1,0:T(1,128)}', space=vmem, size = 0x9000, scoped, tag = 'internal scratch']
  %s0 = inlined_call_operand.vmem [shape: f32[16,8], index: 0, kind: input, shape index: {}]
  %s1 = inlined_call_operand.hbm [shape: f32[288,256], index: 1, kind: input, shape index: {}]
  %s2 = inlined_call_operand.hbm [shape: f32[2,128], index: 2, kind: output, shape index: {}]
  %s3 = sld [smem:[#allocation0]]
  $region22: #{tpu_custom_call.1} parent=0
    _
  %s5 = ssub.s32 1, %s3
  %s6 = scalar_select 0, %s5, %s3
  $region1: #{tpu_custom_call.1} parent=0
    #allocation2 [shape = 'u8[294912]{0}', space=vmem, size = 0x48000, scoped, tag = 'input window, operand 1, single buffered']
    #allocation3 [shape = 's32[1]{0}', space=sflag, size = 0x4, scoped, tag = 'scoped memory for tpu_custom_call.1']
    #allocation4 [shape = 's32[1]{0}', space=sflag, size = 0x4, scoped, tag = 'scoped memory for tpu_custom_call.1']
    #allocation5 [shape = 'u8[1024]{0}', space=vmem, size = 0x400, scoped, tag = 'output window, operand 0, single buffered']
    %7 = vsyncpa [#allocation3], 0
    %8 = vsyncpa [#allocation4], 0
    // Predicated region
    $region2: #{tpu_custom_call.1} parent=1 // pred_check
      _
    $region3: #{tpu_custom_call.1} parent=1 // pred_check_branch
      %10 = sbr.rel (0) target = $region5
    $region4: #{tpu_custom_call.1} parent=1 // pred_region
      _
    $region5: #{tpu_custom_call.1} parent=1 // pred_fallthru
      _
    // Predicated region
    $region6: #{tpu_custom_call.1} parent=1 // pred_check
      _
    $region7: #{tpu_custom_call.1} parent=1 // pred_check_branch
      %12 = sbr.rel (0) target = $region9
    $region8: #{tpu_custom_call.1} parent=1 // pred_region
      %14 = vsyncadd [#allocation3], 0
      %s15 = sshll.u32 %s1, 4
      %s16 = int_to_ptr.hbm [resolvable:$true] %s15
      %s17 = sshll.u32 [#allocation2], 4
      %s18 = int_to_ptr.vmem [resolvable:$true] %s17
      %23 = dma.hbm_to_vmem [thread:$0]  %s16, 9216, %s18, [#allocation3], 256, 256, 16
    $region9: #{tpu_custom_call.1} parent=1 // pred_fallthru
      _
    // Predicated region
    $region10: #{tpu_custom_call.1} parent=1 // pred_check
      _
    $region11: #{tpu_custom_call.1} parent=1 // pred_check_branch
      %25 = sbr.rel (0) target = $region13
    $region12: #{tpu_custom_call.1} parent=1 // pred_region
      %27 = dma.done [#allocation3], 9216
    $region13: #{tpu_custom_call.1} parent=1 // pred_fallthru
      _
    %v28 = vld [vmem:[#allocation2] sm:$0xff]
    %v29 = vld [vmem:[#allocation2 + $0x8] sm:$0xff]
    %v30 = vld [vmem:[#allocation2 + $0x10] sm:$0xff]
    %v31 = vld [vmem:[#allocation2 + $0x18] sm:$0xff]
    %v32 = vld [vmem:[#allocation2 + $0x20] sm:$0xff]
    %v33 = vld [vmem:[#allocation2 + $0x28] sm:$0xff]
    %v34 = vld [vmem:[#allocation2 + $0x30] sm:$0xff]
    %v35 = vld [vmem:[#allocation2 + $0x38] sm:$0xff]
    %v36 = vld [vmem:[#allocation2 + $0x40] sm:$0xff]
    %v37 = vld [vmem:[#allocation2 + $0x48] sm:$0xff]
    %v38 = vld [vmem:[#allocation2 + $0x50] sm:$0xff]
    %v39 = vld [vmem:[#allocation2 + $0x58] sm:$0xff]
    %v40 = vld [vmem:[#allocation2 + $0x60] sm:$0xff]
    %v41 = vld [vmem:[#allocation2 + $0x68] sm:$0xff]
    %v42 = vld [vmem:[#allocation2 + $0x70] sm:$0xff]
    %v43 = vld [vmem:[#allocation2 + $0x78] sm:$0xff]
    %v44 = vld [vmem:[#allocation2 + $0x80] sm:$0xff]
    %v45 = vld [vmem:[#allocation2 + $0x88] sm:$0xff]
    %s46 = scalar_lea.vmem [#allocation2], 144
    %v47 = vld [vmem:[%s46] ss:$8 sm:$0x3]
    %v48 = vld [vmem:[%s0] sm:$0xff]
    %v49 = vld [vmem:[%s0 + $0x8] sm:$0xff]
    %v51 = vperm.slane %v47, 0
    %v52 = vperm.slane %v47, 1
    %vm55 = vcmask 64512
    %v57 = vsel %vm55, %v48, 0
    %v60 = vsel %vm55, %v49, 0
    %62 = vmatpush.msra.mxu0 0.0
    %63 = vmatpush.msra.mxu0 0.0
    %64 = vmatpush.msra.mxu0 0.0
    %65 = vmatpush.msra.mxu0 0.0
    %66 = vmatpush.msra.mxu0 0.0
    %67 = vmatpush.msra.mxu0 0.0
    %68 = vmatpush.msra.mxu0 0.0
    %69 = vmatpush.msra.mxu0 0.0
    %70 = vmatpush.msra.mxu0 0.0
    %71 = vmatpush.msra.mxu0 0.0
    %72 = vmatpush.msra.mxu0 0.0
    %73 = vmatpush.msra.mxu0 0.0
    %74 = vmatpush.msra.mxu0 0.0
    %75 = vmatpush.msra.mxu0 0.0
    %76 = vmatpush.msra.mxu0 0.0
    %77 = vmatpush.msra.mxu0 %v28
    %78 = vmatmul.f32.gmra.mxu0 %v57
    %v79 = vpop.f32.mrf.mxu0
    %v80 = vadd.f32 %v51, %v79
    %81 = vmatmul.f32.gmra.mxu0 %v60
    %v82 = vpop.f32.mrf.mxu0
    %v83 = vadd.f32 %v51, %v82
    %84 = vdwg.mxu0
    %85 = vmatpush.msra.mxu0 0.0
    %86 = vmatpush.msra.mxu0 0.0
    %87 = vmatpush.msra.mxu0 0.0
    %88 = vmatpush.msra.mxu0 0.0
    %89 = vmatpush.msra.mxu0 0.0
    %90 = vmatpush.msra.mxu0 0.0
    %91 = vmatpush.msra.mxu0 0.0
    %92 = vmatpush.msra.mxu0 0.0
    %93 = vmatpush.msra.mxu0 0.0
    %94 = vmatpush.msra.mxu0 0.0
    %95 = vmatpush.msra.mxu0 0.0
    %96 = vmatpush.msra.mxu0 0.0
    %97 = vmatpush.msra.mxu0 0.0
    %98 = vmatpush.msra.mxu0 0.0
    %99 = vmatpush.msra.mxu0 0.0
    %100 = vmatpush.msra.mxu0 %v29
    %101 = vmatmul.f32.gmra.mxu0 %v57
    %v102 = vpop.f32.mrf.mxu0
    %v103 = vadd.f32 %v52, %v102
    %104 = vmatmul.f32.gmra.mxu0 %v60
    %v105 = vpop.f32.mrf.mxu0
    %v106 = vadd.f32 %v52, %v105
    %107 = vdwg.mxu0
    %v108 = vlaneseq
    %v109 = vand.u32 %v108, 127
    %v110 = vadd.s32 %v109, 128
    %vm111 = vcmp.lt.s32.totalorder %v109, 192
    %vm112 = vcmp.lt.s32.totalorder %v110, 192
    %v113 = vsel %vm111, 0.5, 1.0
    %v114 = vsel %vm112, 0.5, 1.0
    %v115 = vsel %vm111, 0.5, 0.0
    %v116 = vsel %vm112, 0.5, 0.0
    %vm117 = vcmask 523264
    %v119 = vsel %vm117, 0.0, 0
    %121 = vmatpush.msra.mxu0 0.0
    %122 = vmatpush.msra.mxu0 0.0
    %123 = vmatpush.msra.mxu0 0.0
    %124 = vmatpush.msra.mxu0 0.0
    %125 = vmatpush.msra.mxu0 0.0
    %126 = vmatpush.msra.mxu0 0.0
    %127 = vmatpush.msra.mxu0 0.0
    %128 = vmatpush.msra.mxu0 0.0
    %129 = vmatpush.msra.mxu0 %v44
    %130 = vmatpush.msra.mxu0 %v42
    %131 = vmatpush.msra.mxu0 %v40
    %132 = vmatpush.msra.mxu0 %v38
    %133 = vmatpush.msra.mxu0 %v36
    %134 = vmatpush.msra.mxu0 %v34
    %135 = vmatpush.msra.mxu0 %v32
    %136 = vmatpush.msra.mxu0 %v30
    %137 = vmatmul.f32.gmra.mxu0 %v119
    %v138 = vpop.f32.mrf.mxu0
    %v139 = vadd.f32 0.0, %v138
    %140 = vdwg.mxu0
    %141 = vmatpush.msra.mxu0 0.0
    %142 = vmatpush.msra.mxu0 0.0
    %143 = vmatpush.msra.mxu0 0.0
    %144 = vmatpush.msra.mxu0 0.0
    %145 = vmatpush.msra.mxu0 0.0
    %146 = vmatpush.msra.mxu0 0.0
    %147 = vmatpush.msra.mxu0 0.0
    %148 = vmatpush.msra.mxu0 0.0
    %149 = vmatpush.msra.mxu0 %v45
    %150 = vmatpush.msra.mxu0 %v43
    %151 = vmatpush.msra.mxu0 %v41
    %152 = vmatpush.msra.mxu0 %v39
    %153 = vmatpush.msra.mxu0 %v37
    %154 = vmatpush.msra.mxu0 %v35
    %155 = vmatpush.msra.mxu0 %v33
    %156 = vmatpush.msra.mxu0 %v31
    %157 = vmatmul.f32.gmra.mxu0 %v119
    %v158 = vpop.f32.mrf.mxu0
    %v159 = vadd.f32 0.0, %v158
    %160 = vdwg.mxu0
    %v161 = vadd.f32 %v80, %v139
    %v162 = vadd.f32 %v103, %v159
    %v163 = vmul.f32 %v161, %v113
    %v164 = vmul.f32 %v162, %v114
    %v165 = vtanh.pop %v163
    %v166 = vtanh.pop %v164
    %v167 = vmul.f32 %v165, %v113
    %v168 = vmul.f32 %v166, %v114
    %v169 = vadd.f32 %v167, %v115
    %v170 = vadd.f32 %v168, %v116
    %v171 = vmul.f32 %v169, 0.0
    %173 = vrot.lane.b32.xlu0 %v170, 64
    %v174 = vpop.permute.xlu0 %173
    %v176 = vmul.f32 %v169, %v174
    %178 = vrot.lane.b32.xlu0 %v176, 64
    %v179 = vpop.permute.xlu0 %178
    %v181 = vadd.f32 %v171, %v179
    %v182 = vtanh.pop %v181
    %184 = vrot.lane.b32.xlu0 %v182, 64
    %v185 = vpop.permute.xlu0 %184
    %v187 = vmul.f32 %v170, %v185
    %v189 = vsel %vm117, %v187, 0
    %191 = vmatpush.msra.mxu0 0.0
    %192 = vmatpush.msra.mxu0 0.0
    %193 = vmatpush.msra.mxu0 0.0
    %194 = vmatpush.msra.mxu0 0.0
    %195 = vmatpush.msra.mxu0 0.0
    %196 = vmatpush.msra.mxu0 0.0
    %197 = vmatpush.msra.mxu0 0.0
    %198 = vmatpush.msra.mxu0 0.0
    %199 = vmatpush.msra.mxu0 %v44
    %200 = vmatpush.msra.mxu0 %v42
    %201 = vmatpush.msra.mxu0 %v40
    %202 = vmatpush.msra.mxu0 %v38
    %203 = vmatpush.msra.mxu0 %v36
    %204 = vmatpush.msra.mxu0 %v34
    %205 = vmatpush.msra.mxu0 %v32
    %206 = vmatpush.msra.mxu0 %v30
    %207 = vmatmul.f32.gmra.mxu0 %v189
    %v208 = vpop.f32.mrf.mxu0
    %v209 = vadd.f32 0.0, %v208
    %210 = vdwg.mxu0
    %211 = vmatpush.msra.mxu0 0.0
    %212 = vmatpush.msra.mxu0 0.0
    %213 = vmatpush.msra.mxu0 0.0
    %214 = vmatpush.msra.mxu0 0.0
    %215 = vmatpush.msra.mxu0 0.0
    %216 = vmatpush.msra.mxu0 0.0
    %217 = vmatpush.msra.mxu0 0.0
    %218 = vmatpush.msra.mxu0 0.0
    %219 = vmatpush.msra.mxu0 %v45
    %220 = vmatpush.msra.mxu0 %v43
    %221 = vmatpush.msra.mxu0 %v41
    %222 = vmatpush.msra.mxu0 %v39
    %223 = vmatpush.msra.mxu0 %v37
    %224 = vmatpush.msra.mxu0 %v35
    %225 = vmatpush.msra.mxu0 %v33
    %226 = vmatpush.msra.mxu0 %v31
    %227 = vmatmul.f32.gmra.mxu0 %v189
    %v228 = vpop.f32.mrf.mxu0
    %v229 = vadd.f32 0.0, %v228
    %230 = vdwg.mxu0
    %v233 = vrot.slane %v209, 6
    %v234 = vrot.slane %v229, 6
    %v237 = vadd.f32 %v80, %v233
    %v238 = vadd.f32 %v103, %v234
    %v239 = vmul.f32 %v237, %v113
    %v240 = vmul.f32 %v238, %v114
    %v241 = vtanh.pop %v239
    %v242 = vtanh.pop %v240
    %v243 = vmul.f32 %v241, %v113
    %v244 = vmul.f32 %v242, %v114
    %v245 = vadd.f32 %v243, %v115
    %v246 = vadd.f32 %v244, %v116
    %v248 = vrot.slane %v181, 6
    %v250 = vmul.f32 %v245, %v248
    %252 = vrot.lane.b32.xlu0 %v246, 64
    %v253 = vpop.permute.xlu0 %252
    %v255 = vmul.f32 %v245, %v253
    %257 = vrot.lane.b32.xlu0 %v255, 64
    %v258 = vpop.permute.xlu0 %257
    %v260 = vadd.f32 %v250, %v258
    %v261 = vtanh.pop %v260
    %263 = vrot.lane.b32.xlu0 %v261, 64
    %v264 = vpop.permute.xlu0 %263
    %v266 = vmul.f32 %v246, %v264
    %v268 = vrot.slane %v266, 2
    %v269 = vsel %vm117, %v268, 0
    %271 = vmatpush.msra.mxu0 0.0
    %272 = vmatpush.msra.mxu0 0.0
    %273 = vmatpush.msra.mxu0 0.0
    %274 = vmatpush.msra.mxu0 0.0
    %275 = vmatpush.msra.mxu0 0.0
    %276 = vmatpush.msra.mxu0 0.0
    %277 = vmatpush.msra.mxu0 0.0
    %278 = vmatpush.msra.mxu0 0.0
    %279 = vmatpush.msra.mxu0 %v44
    %280 = vmatpush.msra.mxu0 %v42
    %281 = vmatpush.msra.mxu0 %v40
    %282 = vmatpush.msra.mxu0 %v38
    %283 = vmatpush.msra.mxu0 %v36
    %284 = vmatpush.msra.mxu0 %v34
    %285 = vmatpush.msra.mxu0 %v32
    %286 = vmatpush.msra.mxu0 %v30
    %287 = vmatmul.f32.gmra.mxu0 %v269
    %v288 = vpop.f32.mrf.mxu0
    %v289 = vadd.f32 0.0, %v288
    %290 = vdwg.mxu0
    %291 = vmatpush.msra.mxu0 0.0
    %292 = vmatpush.msra.mxu0 0.0
    %293 = vmatpush.msra.mxu0 0.0
    %294 = vmatpush.msra.mxu0 0.0
    %295 = vmatpush.msra.mxu0 0.0
    %296 = vmatpush.msra.mxu0 0.0
    %297 = vmatpush.msra.mxu0 0.0
    %298 = vmatpush.msra.mxu0 0.0
    %299 = vmatpush.msra.mxu0 %v45
    %300 = vmatpush.msra.mxu0 %v43
    %301 = vmatpush.msra.mxu0 %v41
    %302 = vmatpush.msra.mxu0 %v39
    %303 = vmatpush.msra.mxu0 %v37
    %304 = vmatpush.msra.mxu0 %v35
    %305 = vmatpush.msra.mxu0 %v33
    %306 = vmatpush.msra.mxu0 %v31
    %307 = vmatmul.f32.gmra.mxu0 %v269
    %v308 = vpop.f32.mrf.mxu0
    %v309 = vadd.f32 0.0, %v308
    %310 = vdwg.mxu0
    %v313 = vrot.slane %v289, 4
    %v314 = vrot.slane %v309, 4
    %v317 = vadd.f32 %v80, %v313
    %v318 = vadd.f32 %v103, %v314
    %v319 = vmul.f32 %v317, %v113
    %v320 = vmul.f32 %v318, %v114
    %v321 = vtanh.pop %v319
    %v322 = vtanh.pop %v320
    %v323 = vmul.f32 %v321, %v113
    %v324 = vmul.f32 %v322, %v114
    %v325 = vadd.f32 %v323, %v115
    %v326 = vadd.f32 %v324, %v116
    %v328 = vrot.slane %v260, 6
    %v330 = vmul.f32 %v325, %v328
    %332 = vrot.lane.b32.xlu0 %v326, 64
    %v333 = vpop.permute.xlu0 %332
    %v335 = vmul.f32 %v325, %v333
    %337 = vrot.lane.b32.xlu0 %v335, 64
    %v338 = vpop.permute.xlu0 %337
    %v340 = vadd.f32 %v330, %v338
    %v341 = vtanh.pop %v340
    %343 = vrot.lane.b32.xlu0 %v341, 64
    %v344 = vpop.permute.xlu0 %343
    %v346 = vmul.f32 %v326, %v344
    %v348 = vrot.slane %v346, 4
    %v349 = vsel %vm117, %v348, 0
    %351 = vmatpush.msra.mxu0 0.0
    %352 = vmatpush.msra.mxu0 0.0
    %353 = vmatpush.msra.mxu0 0.0
    %354 = vmatpush.msra.mxu0 0.0
    %355 = vmatpush.msra.mxu0 0.0
    %356 = vmatpush.msra.mxu0 0.0
    %357 = vmatpush.msra.mxu0 0.0
    %358 = vmatpush.msra.mxu0 0.0
    %359 = vmatpush.msra.mxu0 %v44
    %360 = vmatpush.msra.mxu0 %v42
    %361 = vmatpush.msra.mxu0 %v40
    %362 = vmatpush.msra.mxu0 %v38
    %363 = vmatpush.msra.mxu0 %v36
    %364 = vmatpush.msra.mxu0 %v34
    %365 = vmatpush.msra.mxu0 %v32
    %366 = vmatpush.msra.mxu0 %v30
    %367 = vmatmul.f32.gmra.mxu0 %v349
    %v368 = vpop.f32.mrf.mxu0
    %v369 = vadd.f32 0.0, %v368
    %370 = vdwg.mxu0
    %371 = vmatpush.msra.mxu0 0.0
    %372 = vmatpush.msra.mxu0 0.0
    %373 = vmatpush.msra.mxu0 0.0
    %374 = vmatpush.msra.mxu0 0.0
    %375 = vmatpush.msra.mxu0 0.0
    %376 = vmatpush.msra.mxu0 0.0
    %377 = vmatpush.msra.mxu0 0.0
    %378 = vmatpush.msra.mxu0 0.0
    %379 = vmatpush.msra.mxu0 %v45
    %380 = vmatpush.msra.mxu0 %v43
    %381 = vmatpush.msra.mxu0 %v41
    %382 = vmatpush.msra.mxu0 %v39
    %383 = vmatpush.msra.mxu0 %v37
    %384 = vmatpush.msra.mxu0 %v35
    %385 = vmatpush.msra.mxu0 %v33
    %386 = vmatpush.msra.mxu0 %v31
    %387 = vmatmul.f32.gmra.mxu0 %v349
    %v388 = vpop.f32.mrf.mxu0
    %v389 = vadd.f32 0.0, %v388
    %390 = vdwg.mxu0
    %v393 = vrot.slane %v369, 2
    %v394 = vrot.slane %v389, 2
    %v397 = vadd.f32 %v80, %v393
    %v398 = vadd.f32 %v103, %v394
    %v399 = vmul.f32 %v397, %v113
    %v400 = vmul.f32 %v398, %v114
    %v401 = vtanh.pop %v399
    %v402 = vtanh.pop %v400
    %v403 = vmul.f32 %v401, %v113
    %v404 = vmul.f32 %v402, %v114
    %v405 = vadd.f32 %v403, %v115
    %v406 = vadd.f32 %v404, %v116
    %v408 = vrot.slane %v340, 6
    %v410 = vmul.f32 %v405, %v408
    %412 = vrot.lane.b32.xlu0 %v406, 64
    %v413 = vpop.permute.xlu0 %412
    %v415 = vmul.f32 %v405, %v413
    %417 = vrot.lane.b32.xlu0 %v415, 64
    %v418 = vpop.permute.xlu0 %417
    %v420 = vadd.f32 %v410, %v418
    %v421 = vtanh.pop %v420
    %423 = vrot.lane.b32.xlu0 %v421, 64
    %v424 = vpop.permute.xlu0 %423
    %v426 = vmul.f32 %v406, %v424
    %v428 = vrot.slane %v426, 6
    %v429 = vsel %vm117, %v428, 0
    %431 = vmatpush.msra.mxu0 0.0
    %432 = vmatpush.msra.mxu0 0.0
    %433 = vmatpush.msra.mxu0 0.0
    %434 = vmatpush.msra.mxu0 0.0
    %435 = vmatpush.msra.mxu0 0.0
    %436 = vmatpush.msra.mxu0 0.0
    %437 = vmatpush.msra.mxu0 0.0
    %438 = vmatpush.msra.mxu0 0.0
    %439 = vmatpush.msra.mxu0 %v44
    %440 = vmatpush.msra.mxu0 %v42
    %441 = vmatpush.msra.mxu0 %v40
    %442 = vmatpush.msra.mxu0 %v38
    %443 = vmatpush.msra.mxu0 %v36
    %444 = vmatpush.msra.mxu0 %v34
    %445 = vmatpush.msra.mxu0 %v32
    %446 = vmatpush.msra.mxu0 %v30
    %447 = vmatmul.f32.gmra.mxu0 %v429
    %v448 = vpop.f32.mrf.mxu0
    %v449 = vadd.f32 0.0, %v448
    %450 = vdwg.mxu0
    %451 = vmatpush.msra.mxu0 0.0
    %452 = vmatpush.msra.mxu0 0.0
    %453 = vmatpush.msra.mxu0 0.0
    %454 = vmatpush.msra.mxu0 0.0
    %455 = vmatpush.msra.mxu0 0.0
    %456 = vmatpush.msra.mxu0 0.0
    %457 = vmatpush.msra.mxu0 0.0
    %458 = vmatpush.msra.mxu0 0.0
    %459 = vmatpush.msra.mxu0 %v45
    %460 = vmatpush.msra.mxu0 %v43
    %461 = vmatpush.msra.mxu0 %v41
    %462 = vmatpush.msra.mxu0 %v39
    %463 = vmatpush.msra.mxu0 %v37
    %464 = vmatpush.msra.mxu0 %v35
    %465 = vmatpush.msra.mxu0 %v33
    %466 = vmatpush.msra.mxu0 %v31
    %467 = vmatmul.f32.gmra.mxu0 %v429
    %v468 = vpop.f32.mrf.mxu0
    %v469 = vadd.f32 0.0, %v468
    %470 = vdwg.mxu0
    %v471 = vadd.f32 %v83, %v449
    %v472 = vadd.f32 %v106, %v469
    %v473 = vmul.f32 %v471, %v113
    %v474 = vmul.f32 %v472, %v114
    %v475 = vtanh.pop %v473
    %v476 = vtanh.pop %v474
    %v477 = vmul.f32 %v475, %v113
    %v478 = vmul.f32 %v476, %v114
    %v479 = vadd.f32 %v477, %v115
    %v480 = vadd.f32 %v478, %v116
    %v482 = vrot.slane %v420, 6
    %v484 = vmul.f32 %v479, %v482
    %486 = vrot.lane.b32.xlu0 %v480, 64
    %v487 = vpop.permute.xlu0 %486
    %v489 = vmul.f32 %v479, %v487
    %491 = vrot.lane.b32.xlu0 %v489, 64
    %v492 = vpop.permute.xlu0 %491
    %v494 = vadd.f32 %v484, %v492
    %v495 = vtanh.pop %v494
    %497 = vrot.lane.b32.xlu0 %v495, 64
    %v498 = vpop.permute.xlu0 %497
    %v500 = vmul.f32 %v480, %v498
    %v502 = vsel %vm117, %v500, 0
    %504 = vmatpush.msra.mxu0 0.0
    %505 = vmatpush.msra.mxu0 0.0
    %506 = vmatpush.msra.mxu0 0.0
    %507 = vmatpush.msra.mxu0 0.0
    %508 = vmatpush.msra.mxu0 0.0
    %509 = vmatpush.msra.mxu0 0.0
    %510 = vmatpush.msra.mxu0 0.0
    %511 = vmatpush.msra.mxu0 0.0
    %512 = vmatpush.msra.mxu0 %v44
    %513 = vmatpush.msra.mxu0 %v42
    %514 = vmatpush.msra.mxu0 %v40
    %515 = vmatpush.msra.mxu0 %v38
    %516 = vmatpush.msra.mxu0 %v36
    %517 = vmatpush.msra.mxu0 %v34
    %518 = vmatpush.msra.mxu0 %v32
    %519 = vmatpush.msra.mxu0 %v30
    %520 = vmatmul.f32.gmra.mxu0 %v502
    %v521 = vpop.f32.mrf.mxu0
    %v522 = vadd.f32 0.0, %v521
    %523 = vdwg.mxu0
    %524 = vmatpush.msra.mxu0 0.0
    %525 = vmatpush.msra.mxu0 0.0
    %526 = vmatpush.msra.mxu0 0.0
    %527 = vmatpush.msra.mxu0 0.0
    %528 = vmatpush.msra.mxu0 0.0
    %529 = vmatpush.msra.mxu0 0.0
    %530 = vmatpush.msra.mxu0 0.0
    %531 = vmatpush.msra.mxu0 0.0
    %532 = vmatpush.msra.mxu0 %v45
    %533 = vmatpush.msra.mxu0 %v43
    %534 = vmatpush.msra.mxu0 %v41
    %535 = vmatpush.msra.mxu0 %v39
    %536 = vmatpush.msra.mxu0 %v37
    %537 = vmatpush.msra.mxu0 %v35
    %538 = vmatpush.msra.mxu0 %v33
    %539 = vmatpush.msra.mxu0 %v31
    %540 = vmatmul.f32.gmra.mxu0 %v502
    %v541 = vpop.f32.mrf.mxu0
    %v542 = vadd.f32 0.0, %v541
    %543 = vdwg.mxu0
    %v546 = vrot.slane %v522, 6
    %v547 = vrot.slane %v542, 6
    %v550 = vadd.f32 %v83, %v546
    %v551 = vadd.f32 %v106, %v547
    %v552 = vmul.f32 %v550, %v113
    %v553 = vmul.f32 %v551, %v114
    %v554 = vtanh.pop %v552
    %v555 = vtanh.pop %v553
    %v556 = vmul.f32 %v554, %v113
    %v557 = vmul.f32 %v555, %v114
    %v558 = vadd.f32 %v556, %v115
    %v559 = vadd.f32 %v557, %v116
    %v561 = vrot.slane %v494, 6
    %v563 = vmul.f32 %v558, %v561
    %565 = vrot.lane.b32.xlu0 %v559, 64
    %v566 = vpop.permute.xlu0 %565
    %v568 = vmul.f32 %v558, %v566
    %570 = vrot.lane.b32.xlu0 %v568, 64
    %v571 = vpop.permute.xlu0 %570
    %v573 = vadd.f32 %v563, %v571
    %v574 = vtanh.pop %v573
    %576 = vrot.lane.b32.xlu0 %v574, 64
    %v577 = vpop.permute.xlu0 %576
    %v579 = vmul.f32 %v559, %v577
    %v581 = vrot.slane %v579, 2
    %v582 = vsel %vm117, %v581, 0
    %584 = vmatpush.msra.mxu0 0.0
    %585 = vmatpush.msra.mxu0 0.0
    %586 = vmatpush.msra.mxu0 0.0
    %587 = vmatpush.msra.mxu0 0.0
    %588 = vmatpush.msra.mxu0 0.0
    %589 = vmatpush.msra.mxu0 0.0
    %590 = vmatpush.msra.mxu0 0.0
    %591 = vmatpush.msra.mxu0 0.0
    %592 = vmatpush.msra.mxu0 %v44
    %593 = vmatpush.msra.mxu0 %v42
    %594 = vmatpush.msra.mxu0 %v40
    %595 = vmatpush.msra.mxu0 %v38
    %596 = vmatpush.msra.mxu0 %v36
    %597 = vmatpush.msra.mxu0 %v34
    %598 = vmatpush.msra.mxu0 %v32
    %599 = vmatpush.msra.mxu0 %v30
    %600 = vmatmul.f32.gmra.mxu0 %v582
    %v601 = vpop.f32.mrf.mxu0
    %v602 = vadd.f32 0.0, %v601
    %603 = vdwg.mxu0
    %604 = vmatpush.msra.mxu0 0.0
    %605 = vmatpush.msra.mxu0 0.0
    %606 = vmatpush.msra.mxu0 0.0
    %607 = vmatpush.msra.mxu0 0.0
    %608 = vmatpush.msra.mxu0 0.0
    %609 = vmatpush.msra.mxu0 0.0
    %610 = vmatpush.msra.mxu0 0.0
    %611 = vmatpush.msra.mxu0 0.0
    %612 = vmatpush.msra.mxu0 %v45
    %613 = vmatpush.msra.mxu0 %v43
    %614 = vmatpush.msra.mxu0 %v41
    %615 = vmatpush.msra.mxu0 %v39
    %616 = vmatpush.msra.mxu0 %v37
    %617 = vmatpush.msra.mxu0 %v35
    %618 = vmatpush.msra.mxu0 %v33
    %619 = vmatpush.msra.mxu0 %v31
    %620 = vmatmul.f32.gmra.mxu0 %v582
    %v621 = vpop.f32.mrf.mxu0
    %v622 = vadd.f32 0.0, %v621
    %623 = vdwg.mxu0
    %v626 = vrot.slane %v602, 4
    %v627 = vrot.slane %v622, 4
    %v630 = vadd.f32 %v83, %v626
    %v631 = vadd.f32 %v106, %v627
    %v632 = vmul.f32 %v630, %v113
    %v633 = vmul.f32 %v631, %v114
    %v634 = vtanh.pop %v632
    %v635 = vtanh.pop %v633
    %v636 = vmul.f32 %v634, %v113
    %v637 = vmul.f32 %v635, %v114
    %v638 = vadd.f32 %v636, %v115
    %v639 = vadd.f32 %v637, %v116
    %v641 = vrot.slane %v573, 6
    %v643 = vmul.f32 %v638, %v641
    %645 = vrot.lane.b32.xlu0 %v639, 64
    %v646 = vpop.permute.xlu0 %645
    %v648 = vmul.f32 %v638, %v646
    %650 = vrot.lane.b32.xlu0 %v648, 64
    %v651 = vpop.permute.xlu0 %650
    %v653 = vadd.f32 %v643, %v651
    %v654 = vtanh.pop %v653
    %656 = vrot.lane.b32.xlu0 %v654, 64
    %v657 = vpop.permute.xlu0 %656
    %v659 = vmul.f32 %v639, %v657
    %v661 = vrot.slane %v659, 4
    %v662 = vsel %vm117, %v661, 0
    %664 = vmatpush.msra.mxu0 0.0
    %665 = vmatpush.msra.mxu0 0.0
    %666 = vmatpush.msra.mxu0 0.0
    %667 = vmatpush.msra.mxu0 0.0
    %668 = vmatpush.msra.mxu0 0.0
    %669 = vmatpush.msra.mxu0 0.0
    %670 = vmatpush.msra.mxu0 0.0
    %671 = vmatpush.msra.mxu0 0.0
    %672 = vmatpush.msra.mxu0 %v44
    %673 = vmatpush.msra.mxu0 %v42
    %674 = vmatpush.msra.mxu0 %v40
    %675 = vmatpush.msra.mxu0 %v38
    %676 = vmatpush.msra.mxu0 %v36
    %677 = vmatpush.msra.mxu0 %v34
    %678 = vmatpush.msra.mxu0 %v32
    %679 = vmatpush.msra.mxu0 %v30
    %680 = vmatmul.f32.gmra.mxu0 %v662
    %v681 = vpop.f32.mrf.mxu0
    %v682 = vadd.f32 0.0, %v681
    %683 = vdwg.mxu0
    %684 = vmatpush.msra.mxu0 0.0
    %685 = vmatpush.msra.mxu0 0.0
    %686 = vmatpush.msra.mxu0 0.0
    %687 = vmatpush.msra.mxu0 0.0
    %688 = vmatpush.msra.mxu0 0.0
    %689 = vmatpush.msra.mxu0 0.0
    %690 = vmatpush.msra.mxu0 0.0
    %691 = vmatpush.msra.mxu0 0.0
    %692 = vmatpush.msra.mxu0 %v45
    %693 = vmatpush.msra.mxu0 %v43
    %694 = vmatpush.msra.mxu0 %v41
    %695 = vmatpush.msra.mxu0 %v39
    %696 = vmatpush.msra.mxu0 %v37
    %697 = vmatpush.msra.mxu0 %v35
    %698 = vmatpush.msra.mxu0 %v33
    %699 = vmatpush.msra.mxu0 %v31
    %700 = vmatmul.f32.gmra.mxu0 %v662
    %v701 = vpop.f32.mrf.mxu0
    %v702 = vadd.f32 0.0, %v701
    %703 = vdwg.mxu0
    %v706 = vrot.slane %v682, 2
    %v707 = vrot.slane %v702, 2
    %v710 = vadd.f32 %v83, %v706
    %v711 = vadd.f32 %v106, %v707
    %v712 = vmul.f32 %v710, %v113
    %v713 = vmul.f32 %v711, %v114
    %v714 = vtanh.pop %v712
    %v715 = vtanh.pop %v713
    %v716 = vmul.f32 %v714, %v113
    %v717 = vmul.f32 %v715, %v114
    %v718 = vadd.f32 %v716, %v115
    %v719 = vadd.f32 %v717, %v116
    %v721 = vrot.slane %v653, 6
    %v723 = vmul.f32 %v718, %v721
    %725 = vrot.lane.b32.xlu0 %v719, 64
    %v726 = vpop.permute.xlu0 %725
    %v728 = vmul.f32 %v718, %v726
    %730 = vrot.lane.b32.xlu0 %v728, 64
    %v731 = vpop.permute.xlu0 %730
    %v733 = vadd.f32 %v723, %v731
    %v734 = vtanh.pop %v733
    %736 = vrot.lane.b32.xlu0 %v734, 64
    %v737 = vpop.permute.xlu0 %736
    %v739 = vmul.f32 %v719, %v737
    %v740 = vld [vmem:[#allocation2 + $0xa0] sm:$0xff]
    %v741 = vld [vmem:[#allocation2 + $0xb0] sm:$0xff]
    %v742 = vld [vmem:[#allocation2 + $0xc0] sm:$0xff]
    %v743 = vld [vmem:[#allocation2 + $0xd0] sm:$0xff]
    %v744 = vld [vmem:[#allocation2 + $0xe0] sm:$0xff]
    %v745 = vld [vmem:[#allocation2 + $0xf0] sm:$0xff]
    %v746 = vld [vmem:[#allocation2 + $0x100] sm:$0xff]
    %v747 = vld [vmem:[#allocation2 + $0x110] sm:$0xff]
    %v748 = vld [vmem:[#allocation2 + $0x120] ss:$0 sm:$0xff]
    %v749 = vld [vmem:[#allocation2 + $0x130] sm:$0xff]
    %v750 = vld [vmem:[#allocation2 + $0x140] sm:$0xff]
    %v751 = vld [vmem:[#allocation2 + $0x150] sm:$0xff]
    %v752 = vld [vmem:[#allocation2 + $0x160] sm:$0xff]
    %v753 = vld [vmem:[#allocation2 + $0x170] sm:$0xff]
    %v754 = vld [vmem:[#allocation2 + $0x180] sm:$0xff]
    %v755 = vld [vmem:[#allocation2 + $0x190] sm:$0xff]
    %v756 = vld [vmem:[#allocation2 + $0x1a0] sm:$0xff]
    %v757 = vld [vmem:[#allocation2 + $0x1b0] sm:$0xff]
    %v758 = vld [vmem:[#allocation2 + $0x1c0] sm:$0xff]
    %v759 = vld [vmem:[#allocation2 + $0x1d0] sm:$0xff]
    %v760 = vld [vmem:[#allocation2 + $0x1e0] sm:$0xff]
    %v761 = vld [vmem:[#allocation2 + $0x1f0] sm:$0xff]
    %v762 = vld [vmem:[#allocation2 + $0x200] sm:$0xff]
    %v763 = vld [vmem:[#allocation2 + $0x210] sm:$0xff]
    %v764 = vld [vmem:[#allocation2 + $0x220] sm:$0xff]
    %v765 = vld [vmem:[#allocation2 + $0x230] ss:$0 sm:$0xff]
    %v767 = vrot.slane %v739, 6
    %v768 = vsel %vm117, %v767, 0
    %770 = vmatpush.msra.mxu0 0.0
    %771 = vmatpush.msra.mxu0 0.0
    %772 = vmatpush.msra.mxu0 0.0
    %773 = vmatpush.msra.mxu0 0.0
    %774 = vmatpush.msra.mxu0 0.0
    %775 = vmatpush.msra.mxu0 0.0
    %776 = vmatpush.msra.mxu0 0.0
    %777 = vmatpush.msra.mxu0 0.0
    %778 = vmatpush.msra.mxu0 %v747
    %779 = vmatpush.msra.mxu0 %v746
    %780 = vmatpush.msra.mxu0 %v745
    %781 = vmatpush.msra.mxu0 %v744
    %782 = vmatpush.msra.mxu0 %v743
    %783 = vmatpush.msra.mxu0 %v742
    %784 = vmatpush.msra.mxu0 %v741
    %785 = vmatpush.msra.mxu0 %v740
    %786 = vmatmul.f32.gmra.mxu0 %v768
    %v787 = vpop.f32.mrf.mxu0
    %v788 = vadd.f32 %v748, %v787
    %789 = vdwg.mxu0
    %v790 = vtanh.pop %v788
    %791 = vmatpush.msra.mxu0 %v764
    %792 = vmatpush.msra.mxu0 %v763
    %793 = vmatpush.msra.mxu0 %v762
    %794 = vmatpush.msra.mxu0 %v761
    %795 = vmatpush.msra.mxu0 %v760
    %796 = vmatpush.msra.mxu0 %v759
    %797 = vmatpush.msra.mxu0 %v758
    %798 = vmatpush.msra.mxu0 %v757
    %799 = vmatpush.msra.mxu0 %v756
    %800 = vmatpush.msra.mxu0 %v755
    %801 = vmatpush.msra.mxu0 %v754
    %802 = vmatpush.msra.mxu0 %v753
    %803 = vmatpush.msra.mxu0 %v752
    %804 = vmatpush.msra.mxu0 %v751
    %805 = vmatpush.msra.mxu0 %v750
    %806 = vmatpush.msra.mxu0 %v749
    %807 = vmatmul.f32.gmra.mxu0 %v790
    %v808 = vpop.f32.mrf.mxu0
    %v809 = vadd.f32 %v765, %v808
    %810 = vdwg.mxu0
    %811 = vst [vmem:[#allocation5] sm:$0x3] %v809
    // Predicated region
    $region14: #{tpu_custom_call.1} parent=1 // pred_check
      _
    $region15: #{tpu_custom_call.1} parent=1 // pred_check_branch
      %813 = sbr.rel (0) target = $region17
    $region16: #{tpu_custom_call.1} parent=1 // pred_region
      %815 = vsyncadd [#allocation4], 0
      %s817 = sshll.u32 [#allocation5], 4
      %s818 = int_to_ptr.vmem [resolvable:$true] %s817
      %s819 = sshll.u32 %s2, 4
      %s820 = int_to_ptr.hbm [resolvable:$true] %s819
      %822 = dma.vmem_to_hbm [thread:$0]  %s818, 32, %s820, [#allocation4]
    $region17: #{tpu_custom_call.1} parent=1 // pred_fallthru
      _
    // Predicated region
    $region18: #{tpu_custom_call.1} parent=1 // pred_check
      _
    $region19: #{tpu_custom_call.1} parent=1 // pred_check_branch
      %824 = sbr.rel (0) target = $region21
    $region20: #{tpu_custom_call.1} parent=1 // pred_region
      %826 = dma.done [#allocation4], 32
    $region21: #{tpu_custom_call.1} parent=1 // pred_fallthru
      _
    %827 = vsyncpa [#allocation3], 1
    %828 = vsyncpa [#allocation4], 1

</llo_original>
